<compile_context>
chip_gen: v7x
topology: tpu7x:2x2x1
jax: 0.10.0
libtpu: 0.0.40
codegen_flags: <defaults>
</compile_context>

<pallas_src>
from itertools import permutations

import numpy as np
import jax
import jax.numpy as jnp
from jax.experimental import pallas as pl
from jax.experimental.pallas import tpu as pltpu


_CLASS_CHUNK_MAX = 512          # class-axis (sublane) chunk; multiple of 8
_LANE_TILE_CAP = 1024           # diminishing returns past ~1024 lanes


def _round_up(x, m):
    return ((x + m - 1) // m) * m


def _device_kind():
    try:
        return jax.devices()[0].device_kind.lower()
    except Exception:
        return ""


def _vmem_limit_bytes():
    """Per-generation scoped-VMEM limit (v7x: 64 MiB/TC physical; v5e/v6e: 128 MiB)."""
    phys = None
    try:
        phys = int(pltpu.get_tpu_info().vmem_capacity_bytes)
    except Exception:
        phys = None
    if phys is None:
        phys = 64 * 1024 * 1024 if "v7" in _device_kind() else 128 * 1024 * 1024
    if phys <= 64 * 1024 * 1024:
        return 48 * 1024 * 1024            # v7x: stay well inside 64 MiB per TC
    return 64 * 1024 * 1024                # v5e / v6e: 128 MiB physical


def _pick_tiles(B, S, C, in_itemsize, vmem_limit, two_cores):
    """Class-chunk size + batch (lane) tile sized from the actual live VMEM bytes."""
    if C <= _CLASS_CHUNK_MAX:
        ck, c_pad = C, C
    else:
        ck = _CLASS_CHUNK_MAX
        c_pad = _round_up(C, ck)

    # live bytes per batch lane (column) in VMEM:
    per_lane = (2 * S * ck * in_itemsize     # double-buffered preds chunk (input dtype)
                + 2 * S * 4                  # double-buffered int32 targets
                + 2 * S * ck * 4             # f32 chunk copy + exp temp
                + 3 * ck * 4                 # class iota / mask / where temps
                + (2 * S + S * S) * 4        # scratch: running max, exp-sum, gathered
                + 2 * 4)                     # double-buffered f32 output row
    budget = int(vmem_limit * 0.85)          # headroom for Mosaic internals
    tb = (budget // per_lane) // 128 * 128
    tb = max(128, min(tb, _LANE_TILE_CAP))

    b_ceiling = _round_up(B, 128)
    if two_cores and b_ceiling >= 256:
        # v7x: force >=2 batch grid steps so the "parallel" axis spans both TensorCores
        tb = min(tb, _round_up(pl.cdiv(b_ceiling, 2), 128))
    tb = min(tb, b_ceiling)
    return tb, ck, c_pad


def _make_pce_kernel(perms, low_precision_gather):
    """perms: host-side tuple of permutations; closed over -> static VPU unroll."""
    S = len(perms[0])

    def kernel(preds_ref, tgt_ref, out_ref, m_scr, s_scr, g_scr):
        # preds_ref: (S, CK, TB) input dtype; class chunk on sublanes, batch tile on lanes
        # tgt_ref:   (S, TB) int32
        # out_ref:   (1, 1, TB) f32 per-batch-row loss for this tile
        # m_scr:     (S, TB)  f32 running max          (online logsumexp)
        # s_scr:     (S, TB)  f32 running sum of exp   (online logsumexp)
        # g_scr:     (S, S, TB) f32, g_scr[j, i] = preds[b, i, tgt[b, j]]
        c_idx = pl.program_id(1)
        ck = preds_ref.shape[1]
        tb = preds_ref.shape[2]

        @pl.when(c_idx == 0)
        def _init():
            m_scr[...] = jnp.full_like(m_scr, -jnp.inf)
            s_scr[...] = jnp.zeros_like(s_scr)
            g_scr[...] = jnp.zeros_like(g_scr)

        raw = preds_ref[...]                               # (S, CK, TB) input dtype
        x = raw.astype(jnp.float32)                        # bounded chunk-sized f32 temp
        tgt = tgt_ref[...]                                 # (S, TB) int32

        # --- online logsumexp over the class (sublane) axis; batch stays on lanes ---
        m_prev = m_scr[...]
        m_new = jnp.maximum(m_prev, jnp.max(x, axis=1))    # (S, TB)
        s_scr[...] = (s_scr[...] * jnp.exp(m_prev - m_new)
                      + jnp.sum(jnp.exp(x - m_new[:, None, :]), axis=1))
        m_scr[...] = m_new

        # --- target gather for this chunk: g[j, i] += preds[b, i, tgt[b, j]] ---
        # exactly one class matches per (j, b) over all chunks, so the masked "sum" is a
        # pure selection; with bf16 inputs on v6e/v7x it runs on the packed bf16 block.
        xg = raw if low_precision_gather else x
        zero = jnp.zeros((), xg.dtype)
        c_iota = (jax.lax.broadcasted_iota(jnp.int32, (ck, tb), 0)
                  + c_idx * ck)                            # global class id on sublanes
        for j in range(S):                                 # static unroll; S is tiny
            mask_j = c_iota == tgt[j:j + 1, :]             # (CK, TB)
            picked = jnp.sum(jnp.where(mask_j[None, :, :], xg, zero),
                             axis=1).astype(jnp.float32)   # (S, TB): preds[b, i, tgt[b, j]]
            g_scr[j] += picked

        # --- finalize on the last class chunk ---
        @pl.when(c_idx == pl.num_programs(1) - 1)
        def _finalize():
            lse = m_scr[...] + jnp.log(s_scr[...])                    # (S, TB)
            total_lse = jnp.sum(lse, axis=0, keepdims=True)           # (1, TB)
            g = g_scr[...]                                            # (S, S, TB)
            # min over permutations of sum_i CE == total_lse - max_p perm_score[p]
            best = None
            for perm in perms:                                        # static P*S VPU adds
                sc = g[perm[0], 0:1, :]                               # (1, TB)
                for i in range(1, S):
                    sc = sc + g[perm[i], i:i + 1, :]
                best = sc if best is None else jnp.maximum(best, sc)
            out_ref[...] = (total_lse - best)[None, :, :]             # (1, 1, TB)

    return kernel


def permutation_cross_entropy(preds, targets):
    """preds: [B, S, C] float (f32 or bf16), targets: [B, S] int. Returns scalar f32 loss."""
    B, S, C = preds.shape
    perms = tuple(permutations(range(S)))      # host-side enumeration (P = S!)

    kind = _device_kind()
    two_cores = "v7" in kind                                    # v7x: 2 TensorCores/chip
    pre_v6 = any(t in kind for t in ("v2", "v3", "v4", "v5"))   # no bf16 VPU on v5e/older
    low_precision_gather = (preds.dtype == jnp.bfloat16) and not pre_v6

    vmem_limit = _vmem_limit_bytes()
    TB, CK, C_pad = _pick_tiles(B, S, C, np.dtype(preds.dtype).itemsize,
                                vmem_limit, two_cores)
    B_pad = _round_up(B, TB)
    NB = B_pad // TB
    NC = C_pad // CK

    # Lane-dense layout: batch on lanes, classes on sublanes (no wrapper-side upcast).
    preds_t = jnp.transpose(preds, (1, 2, 0))                              # (S, C, B)
    if C_pad != C:
        # padded classes get a huge negative logit: they vanish from logsumexp and their
        # class ids (>= C) can never match a target, so the gather ignores them.
        preds_t = jnp.pad(preds_t, ((0, 0), (0, C_pad - C), (0, 0)),
                          constant_values=-1e30)
    preds_t = jnp.pad(preds_t, ((0, 0), (0, 0), (0, B_pad - B)))           # (S, C_pad, B_pad)
    tgt_t = jnp.pad(jnp.transpose(targets.astype(jnp.int32), (1, 0)),
                    ((0, 0), (0, B_pad - B)))                              # (S, B_pad)

    kernel = _make_pce_kernel(perms, low_precision_gather)

    # TODO(synk): if an xprof trace on v7x shows exposed DMA after the VALU trims, add
    # pipeline_mode=pl.Buffered(3) to the preds BlockSpec only.
    out = pl.pallas_call(
        kernel,
        out_shape=jax.ShapeDtypeStruct((NB, 1, TB), jnp.float32),
        grid=(NB, NC),
        in_specs=[
            pl.BlockSpec((S, CK, TB), lambda b, c: (0, c, b)),   # preds chunk (pipelined)
            pl.BlockSpec((S, TB), lambda b, c: (0, b)),          # targets tile (c-invariant)
        ],
        out_specs=pl.BlockSpec((1, 1, TB), lambda b, c: (b, 0, 0)),
        scratch_shapes=[
            pltpu.VMEM((S, TB), jnp.float32),       # running max
            pltpu.VMEM((S, TB), jnp.float32),       # running exp-sum
            pltpu.VMEM((S, S, TB), jnp.float32),    # gathered target scores
        ],
        compiler_params=pltpu.CompilerParams(
            dimension_semantics=("parallel", "arbitrary"),
            vmem_limit_bytes=vmem_limit,
        ),
    )(preds_t, tgt_t)

    # per-row partial losses -> drop batch padding, mean over the real batch (in JAX)
    return jnp.sum(out.reshape(-1)[:B]) / B


def _pce_reference(preds, targets):
    """Pure-JAX reference replicating the PyTorch forward exactly."""
    B, S, C = preds.shape
    perms = jnp.asarray(list(permutations(range(S))), dtype=jnp.int32)   # (P, S)
    lse = jax.scipy.special.logsumexp(preds, axis=-1)                    # (B, S)
    total_lse = jnp.sum(lse, axis=-1)                                    # (B,)
    b_idx = jnp.arange(B)[:, None, None]
    i_idx = jnp.arange(S)[None, :, None]
    gathered = preds[b_idx, i_idx, targets[:, None, :]]                  # (B, S, S)
    perm_oh = jax.nn.one_hot(perms, S, dtype=preds.dtype)                # (P, S, S)
    perm_scores = jnp.einsum('pij,bij->bp', perm_oh, gathered)           # (B, P)
    return jnp.mean(total_lse - jnp.max(perm_scores, axis=-1))


if __name__ == "__main__":
    key = jax.random.PRNGKey(0)
    k1, k2, k3 = jax.random.split(key, 3)

    # batch, num_speaker_to_demix (== num_perm), num_classes
    B, S, C = 4, 3, 10
    preds = jax.random.normal(k1, (B, S, C), dtype=jnp.float32)
    targets = jax.random.randint(k2, (B, S), 0, C, dtype=jnp.int32)

    # f32 path
    loss = jax.block_until_ready(permutation_cross_entropy(preds, targets))
    ref = jax.block_until_ready(_pce_reference(preds, targets))
    assert np.allclose(np.asarray(loss), np.asarray(ref), rtol=1e-5, atol=1e-5), (loss, ref)

    # bf16 inputs: no wrapper upcast; gather may run in bf16 on v6e/v7x, logsumexp stays f32
    preds_bf16 = preds.astype(jnp.bfloat16)
    loss_bf = jax.block_until_ready(permutation_cross_entropy(preds_bf16, targets))
    ref_bf = jax.block_until_ready(_pce_reference(preds_bf16.astype(jnp.float32), targets))
    assert np.allclose(np.asarray(loss_bf), np.asarray(ref_bf), rtol=1e-4, atol=1e-4), (loss_bf, ref_bf)

    # large class count exercises the class-chunked online-logsumexp path (NC > 1)
    B2, S2, C2 = 4, 3, 1000
    preds2 = jax.random.normal(k3, (B2, S2, C2), dtype=jnp.float32)
    targets2 = jax.random.randint(k2, (B2, S2), 0, C2, dtype=jnp.int32)
    loss2 = jax.block_until_ready(permutation_cross_entropy(preds2, targets2))
    ref2 = jax.block_until_ready(_pce_reference(preds2, targets2))
    assert np.allclose(np.asarray(loss2), np.asarray(ref2), rtol=1e-4, atol=1e-5), (loss2, ref2)

    print("KERNEL_OK")
</pallas_src>

<mosaic_0001>
module attributes {stable_mosaic.version = 11 : i64} {
  func.func @kernel(%arg0: i32, %arg1: i32, %arg2: memref<3x10x128xf32, #tpu.memory_space<vmem>>, %arg3: memref<3x128xi32, #tpu.memory_space<vmem>>, %arg4: memref<1x1x128xf32, #tpu.memory_space<vmem>>, %arg5: memref<3x128xf32, #tpu.memory_space<vmem>>, %arg6: memref<3x128xf32, #tpu.memory_space<vmem>>, %arg7: memref<3x3x128xf32, #tpu.memory_space<vmem>>) attributes {dimension_semantics = [#tpu.dimension_semantics<parallel>, #tpu.dimension_semantics<arbitrary>], iteration_bounds = array<i64: 1, 1>, scalar_prefetch = 0 : i64, scratch_operands = 3 : i64, tpu.core_type = #tpu.core_type<tc>, window_params = [{transform_indices = @transform_0, window_bounds = array<i64: 3, 10, 128>}, {transform_indices = @transform_1, window_bounds = array<i64: 3, 128>}, {transform_indices = @transform_2, window_bounds = array<i64: 1, 1, 128>}]} {
    %c0_i32 = arith.constant 0 : i32
    %0 = arith.cmpi eq, %arg1, %c0_i32 : i32
    %1 = arith.extui %0 : i1 to i32
    %c0_i32_0 = arith.constant 0 : i32
    %2 = arith.cmpi ne, %1, %c0_i32_0 : i32
    scf.if %2 {
      %cst_38 = arith.constant 0xFF800000 : f32
      %72 = vector.broadcast %cst_38 : f32 to vector<3x128xf32>
      %c0_39 = arith.constant 0 : index
      %c0_40 = arith.constant 0 : index
      %73 = vector.load %arg5[%c0_39, %c0_40] : memref<3x128xf32, #tpu.memory_space<vmem>>, vector<3x128xf32>
      tpu.vector_store %arg5[%c0_39, %c0_40], %72 {strides = array<i32>} : memref<3x128xf32, #tpu.memory_space<vmem>>, vector<3x128xf32>,
      %cst_41 = arith.constant 0.000000e+00 : f32
      %74 = vector.broadcast %cst_41 : f32 to vector<3x128xf32>
      %c0_42 = arith.constant 0 : index
      %c0_43 = arith.constant 0 : index
      %75 = vector.load %arg6[%c0_42, %c0_43] : memref<3x128xf32, #tpu.memory_space<vmem>>, vector<3x128xf32>
      tpu.vector_store %arg6[%c0_42, %c0_43], %74 {strides = array<i32>} : memref<3x128xf32, #tpu.memory_space<vmem>>, vector<3x128xf32>,
      %cst_44 = arith.constant 0.000000e+00 : f32
      %76 = vector.broadcast %cst_44 : f32 to vector<3x3x128xf32>
      %c0_45 = arith.constant 0 : index
      %c0_46 = arith.constant 0 : index
      %c0_47 = arith.constant 0 : index
      %77 = vector.load %arg7[%c0_45, %c0_46, %c0_47] : memref<3x3x128xf32, #tpu.memory_space<vmem>>, vector<3x3x128xf32>
      tpu.vector_store %arg7[%c0_45, %c0_46, %c0_47], %76 {strides = array<i32>} : memref<3x3x128xf32, #tpu.memory_space<vmem>>, vector<3x3x128xf32>,
    } else {
    }
    %c0 = arith.constant 0 : index
    %c0_1 = arith.constant 0 : index
    %c0_2 = arith.constant 0 : index
    %3 = vector.load %arg2[%c0, %c0_1, %c0_2] : memref<3x10x128xf32, #tpu.memory_space<vmem>>, vector<3x10x128xf32>
    %c0_3 = arith.constant 0 : index
    %c0_4 = arith.constant 0 : index
    %4 = vector.load %arg3[%c0_3, %c0_4] : memref<3x128xi32, #tpu.memory_space<vmem>>, vector<3x128xi32>
    %c0_5 = arith.constant 0 : index
    %c0_6 = arith.constant 0 : index
    %5 = vector.load %arg5[%c0_5, %c0_6] : memref<3x128xf32, #tpu.memory_space<vmem>>, vector<3x128xf32>
    %cst = arith.constant dense<0xFF800000> : vector<3x128xf32>
    %6 = vector.multi_reduction <maximumf>, %3, %cst [1] : vector<3x10x128xf32> to vector<3x128xf32>
    %7 = arith.maximumf %5, %6 : vector<3x128xf32>
    %c0_7 = arith.constant 0 : index
    %c0_8 = arith.constant 0 : index
    %8 = vector.load %arg6[%c0_7, %c0_8] : memref<3x128xf32, #tpu.memory_space<vmem>>, vector<3x128xf32>
    %9 = arith.subf %5, %7 : vector<3x128xf32>
    %10 = math.exp %9 : vector<3x128xf32>
    %11 = arith.mulf %8, %10 : vector<3x128xf32>
    %12 = vector.shape_cast %7 : vector<3x128xf32> to vector<3x1x128xf32>
    %13 = vector.broadcast %12 : vector<3x1x128xf32> to vector<3x10x128xf32>
    %14 = arith.subf %3, %13 : vector<3x10x128xf32>
    %15 = math.exp %14 : vector<3x10x128xf32>
    %cst_9 = arith.constant dense<0.000000e+00> : vector<3x128xf32>
    %16 = vector.multi_reduction <add>, %15, %cst_9 [1] : vector<3x10x128xf32> to vector<3x128xf32>
    %17 = arith.addf %11, %16 : vector<3x128xf32>
    %c0_10 = arith.constant 0 : index
    %c0_11 = arith.constant 0 : index
    %18 = vector.load %arg6[%c0_10, %c0_11] : memref<3x128xf32, #tpu.memory_space<vmem>>, vector<3x128xf32>
    tpu.vector_store %arg6[%c0_10, %c0_11], %17 {strides = array<i32>} : memref<3x128xf32, #tpu.memory_space<vmem>>, vector<3x128xf32>,
    %c0_12 = arith.constant 0 : index
    %c0_13 = arith.constant 0 : index
    %19 = vector.load %arg5[%c0_12, %c0_13] : memref<3x128xf32, #tpu.memory_space<vmem>>, vector<3x128xf32>
    tpu.vector_store %arg5[%c0_12, %c0_13], %7 {strides = array<i32>} : memref<3x128xf32, #tpu.memory_space<vmem>>, vector<3x128xf32>,
    %20 = tpu.iota {dimensions = array<i32: 0>} : vector<10x128xi32>
    %c10_i32 = arith.constant 10 : i32
    %21 = arith.muli %arg1, %c10_i32 : i32
    %22 = vector.broadcast %21 : i32 to vector<10x128xi32>
    %23 = arith.addi %20, %22 : vector<10x128xi32>
    %24 = vector.extract_strided_slice %4 {offsets = [0, 0], sizes = [1, 128], strides = [1, 1]} : vector<3x128xi32> to vector<1x128xi32>
    %25 = vector.broadcast %24 : vector<1x128xi32> to vector<10x128xi32>
    %26 = arith.cmpi eq, %23, %25 : vector<10x128xi32>
    %27 = vector.shape_cast %26 : vector<10x128xi1> to vector<1x10x128xi1>
    %cst_14 = arith.constant 0.000000e+00 : f32
    %28 = vector.shape_cast %27 : vector<1x10x128xi1> to vector<1x10x128xi1>
    %29 = vector.broadcast %28 : vector<1x10x128xi1> to vector<3x10x128xi1>
    %30 = vector.broadcast %cst_14 : f32 to vector<3x10x128xf32>
    %31 = arith.select %29, %3, %30 : vector<3x10x128xi1>, vector<3x10x128xf32>
    %cst_15 = arith.constant dense<0.000000e+00> : vector<3x128xf32>
    %32 = vector.multi_reduction <add>, %31, %cst_15 [1] : vector<3x10x128xf32> to vector<3x128xf32>
    %c0_16 = arith.constant 0 : index
    %c0_17 = arith.constant 0 : index
    %c0_18 = arith.constant 0 : index
    %33 = vector.load %arg7[%c0_16, %c0_17, %c0_18] : memref<3x3x128xf32, #tpu.memory_space<vmem>>, vector<1x3x128xf32>
    %34 = vector.shape_cast %33 : vector<1x3x128xf32> to vector<3x128xf32>
    %35 = arith.addf %34, %32 : vector<3x128xf32>
    %c0_19 = arith.constant 0 : index
    %c0_20 = arith.constant 0 : index
    %c0_21 = arith.constant 0 : index
    %36 = vector.load %arg7[%c0_19, %c0_20, %c0_21] : memref<3x3x128xf32, #tpu.memory_space<vmem>>, vector<1x3x128xf32>
    %37 = vector.shape_cast %36 : vector<1x3x128xf32> to vector<3x128xf32>
    %38 = vector.shape_cast %35 : vector<3x128xf32> to vector<1x3x128xf32>
    tpu.vector_store %arg7[%c0_19, %c0_20, %c0_21], %38 {strides = array<i32>} : memref<3x3x128xf32, #tpu.memory_space<vmem>>, vector<1x3x128xf32>,
    %39 = vector.extract_strided_slice %4 {offsets = [1, 0], sizes = [1, 128], strides = [1, 1]} : vector<3x128xi32> to vector<1x128xi32>
    %40 = vector.broadcast %39 : vector<1x128xi32> to vector<10x128xi32>
    %41 = arith.cmpi eq, %23, %40 : vector<10x128xi32>
    %42 = vector.shape_cast %41 : vector<10x128xi1> to vector<1x10x128xi1>
    %cst_22 = arith.constant 0.000000e+00 : f32
    %43 = vector.shape_cast %42 : vector<1x10x128xi1> to vector<1x10x128xi1>
    %44 = vector.broadcast %43 : vector<1x10x128xi1> to vector<3x10x128xi1>
    %45 = vector.broadcast %cst_22 : f32 to vector<3x10x128xf32>
    %46 = arith.select %44, %3, %45 : vector<3x10x128xi1>, vector<3x10x128xf32>
    %cst_23 = arith.constant dense<0.000000e+00> : vector<3x128xf32>
    %47 = vector.multi_reduction <add>, %46, %cst_23 [1] : vector<3x10x128xf32> to vector<3x128xf32>
    %c1 = arith.constant 1 : index
    %c0_24 = arith.constant 0 : index
    %c0_25 = arith.constant 0 : index
    %48 = vector.load %arg7[%c1, %c0_24, %c0_25] : memref<3x3x128xf32, #tpu.memory_space<vmem>>, vector<1x3x128xf32>
    %49 = vector.shape_cast %48 : vector<1x3x128xf32> to vector<3x128xf32>
    %50 = arith.addf %49, %47 : vector<3x128xf32>
    %c1_26 = arith.constant 1 : index
    %c0_27 = arith.constant 0 : index
    %c0_28 = arith.constant 0 : index
    %51 = vector.load %arg7[%c1_26, %c0_27, %c0_28] : memref<3x3x128xf32, #tpu.memory_space<vmem>>, vector<1x3x128xf32>
    %52 = vector.shape_cast %51 : vector<1x3x128xf32> to vector<3x128xf32>
    %53 = vector.shape_cast %50 : vector<3x128xf32> to vector<1x3x128xf32>
    tpu.vector_store %arg7[%c1_26, %c0_27, %c0_28], %53 {strides = array<i32>} : memref<3x3x128xf32, #tpu.memory_space<vmem>>, vector<1x3x128xf32>,
    %54 = vector.extract_strided_slice %4 {offsets = [2, 0], sizes = [1, 128], strides = [1, 1]} : vector<3x128xi32> to vector<1x128xi32>
    %55 = vector.broadcast %54 : vector<1x128xi32> to vector<10x128xi32>
    %56 = arith.cmpi eq, %23, %55 : vector<10x128xi32>
    %57 = vector.shape_cast %56 : vector<10x128xi1> to vector<1x10x128xi1>
    %cst_29 = arith.constant 0.000000e+00 : f32
    %58 = vector.shape_cast %57 : vector<1x10x128xi1> to vector<1x10x128xi1>
    %59 = vector.broadcast %58 : vector<1x10x128xi1> to vector<3x10x128xi1>
    %60 = vector.broadcast %cst_29 : f32 to vector<3x10x128xf32>
    %61 = arith.select %59, %3, %60 : vector<3x10x128xi1>, vector<3x10x128xf32>
    %cst_30 = arith.constant dense<0.000000e+00> : vector<3x128xf32>
    %62 = vector.multi_reduction <add>, %61, %cst_30 [1] : vector<3x10x128xf32> to vector<3x128xf32>
    %c2 = arith.constant 2 : index
    %c0_31 = arith.constant 0 : index
    %c0_32 = arith.constant 0 : index
    %63 = vector.load %arg7[%c2, %c0_31, %c0_32] : memref<3x3x128xf32, #tpu.memory_space<vmem>>, vector<1x3x128xf32>
    %64 = vector.shape_cast %63 : vector<1x3x128xf32> to vector<3x128xf32>
    %65 = arith.addf %64, %62 : vector<3x128xf32>
    %c2_33 = arith.constant 2 : index
    %c0_34 = arith.constant 0 : index
    %c0_35 = arith.constant 0 : index
    %66 = vector.load %arg7[%c2_33, %c0_34, %c0_35] : memref<3x3x128xf32, #tpu.memory_space<vmem>>, vector<1x3x128xf32>
    %67 = vector.shape_cast %66 : vector<1x3x128xf32> to vector<3x128xf32>
    %68 = vector.shape_cast %65 : vector<3x128xf32> to vector<1x3x128xf32>
    tpu.vector_store %arg7[%c2_33, %c0_34, %c0_35], %68 {strides = array<i32>} : memref<3x3x128xf32, #tpu.memory_space<vmem>>, vector<1x3x128xf32>,
    %c0_i32_36 = arith.constant 0 : i32
    %69 = arith.cmpi eq, %arg1, %c0_i32_36 : i32
    %70 = arith.extui %69 : i1 to i32
    %c0_i32_37 = arith.constant 0 : i32
    %71 = arith.cmpi ne, %70, %c0_i32_37 : i32
    scf.if %71 {
      %c0_38 = arith.constant 0 : index
      %c0_39 = arith.constant 0 : index
      %72 = vector.load %arg5[%c0_38, %c0_39] : memref<3x128xf32, #tpu.memory_space<vmem>>, vector<3x128xf32>
      %c0_40 = arith.constant 0 : index
      %c0_41 = arith.constant 0 : index
      %73 = vector.load %arg6[%c0_40, %c0_41] : memref<3x128xf32, #tpu.memory_space<vmem>>, vector<3x128xf32>
      %74 = math.log %73 : vector<3x128xf32>
      %75 = arith.addf %72, %74 : vector<3x128xf32>
      %cst_42 = arith.constant dense<0.000000e+00> : vector<128xf32>
      %76 = vector.multi_reduction <add>, %75, %cst_42 [0] : vector<3x128xf32> to vector<128xf32>
      %77 = vector.shape_cast %76 : vector<128xf32> to vector<1x128xf32>
      %c0_43 = arith.constant 0 : index
      %c0_44 = arith.constant 0 : index
      %c0_45 = arith.constant 0 : index
      %78 = vector.load %arg7[%c0_43, %c0_44, %c0_45] : memref<3x3x128xf32, #tpu.memory_space<vmem>>, vector<3x3x128xf32>
      %79 = vector.extract_strided_slice %78 {offsets = [0, 0, 0], sizes = [1, 1, 128], strides = [1, 1, 1]} : vector<3x3x128xf32> to vector<1x1x128xf32>
      %80 = vector.shape_cast %79 : vector<1x1x128xf32> to vector<1x128xf32>
      %81 = vector.extract_strided_slice %78 {offsets = [1, 1, 0], sizes = [1, 1, 128], strides = [1, 1, 1]} : vector<3x3x128xf32> to vector<1x1x128xf32>
      %82 = vector.shape_cast %81 : vector<1x1x128xf32> to vector<1x128xf32>
      %83 = arith.addf %80, %82 : vector<1x128xf32>
      %84 = vector.extract_strided_slice %78 {offsets = [2, 2, 0], sizes = [1, 1, 128], strides = [1, 1, 1]} : vector<3x3x128xf32> to vector<1x1x128xf32>
      %85 = vector.shape_cast %84 : vector<1x1x128xf32> to vector<1x128xf32>
      %86 = arith.addf %83, %85 : vector<1x128xf32>
      %87 = vector.extract_strided_slice %78 {offsets = [0, 0, 0], sizes = [1, 1, 128], strides = [1, 1, 1]} : vector<3x3x128xf32> to vector<1x1x128xf32>
      %88 = vector.shape_cast %87 : vector<1x1x128xf32> to vector<1x128xf32>
      %89 = vector.extract_strided_slice %78 {offsets = [2, 1, 0], sizes = [1, 1, 128], strides = [1, 1, 1]} : vector<3x3x128xf32> to vector<1x1x128xf32>
      %90 = vector.shape_cast %89 : vector<1x1x128xf32> to vector<1x128xf32>
      %91 = arith.addf %88, %90 : vector<1x128xf32>
      %92 = vector.extract_strided_slice %78 {offsets = [1, 2, 0], sizes = [1, 1, 128], strides = [1, 1, 1]} : vector<3x3x128xf32> to vector<1x1x128xf32>
      %93 = vector.shape_cast %92 : vector<1x1x128xf32> to vector<1x128xf32>
      %94 = arith.addf %91, %93 : vector<1x128xf32>
      %95 = arith.maximumf %86, %94 : vector<1x128xf32>
      %96 = vector.extract_strided_slice %78 {offsets = [1, 0, 0], sizes = [1, 1, 128], strides = [1, 1, 1]} : vector<3x3x128xf32> to vector<1x1x128xf32>
      %97 = vector.shape_cast %96 : vector<1x1x128xf32> to vector<1x128xf32>
      %98 = vector.extract_strided_slice %78 {offsets = [0, 1, 0], sizes = [1, 1, 128], strides = [1, 1, 1]} : vector<3x3x128xf32> to vector<1x1x128xf32>
      %99 = vector.shape_cast %98 : vector<1x1x128xf32> to vector<1x128xf32>
      %100 = arith.addf %97, %99 : vector<1x128xf32>
      %101 = vector.extract_strided_slice %78 {offsets = [2, 2, 0], sizes = [1, 1, 128], strides = [1, 1, 1]} : vector<3x3x128xf32> to vector<1x1x128xf32>
      %102 = vector.shape_cast %101 : vector<1x1x128xf32> to vector<1x128xf32>
      %103 = arith.addf %100, %102 : vector<1x128xf32>
      %104 = arith.maximumf %95, %103 : vector<1x128xf32>
      %105 = vector.extract_strided_slice %78 {offsets = [1, 0, 0], sizes = [1, 1, 128], strides = [1, 1, 1]} : vector<3x3x128xf32> to vector<1x1x128xf32>
      %106 = vector.shape_cast %105 : vector<1x1x128xf32> to vector<1x128xf32>
      %107 = vector.extract_strided_slice %78 {offsets = [2, 1, 0], sizes = [1, 1, 128], strides = [1, 1, 1]} : vector<3x3x128xf32> to vector<1x1x128xf32>
      %108 = vector.shape_cast %107 : vector<1x1x128xf32> to vector<1x128xf32>
      %109 = arith.addf %106, %108 : vector<1x128xf32>
      %110 = vector.extract_strided_slice %78 {offsets = [0, 2, 0], sizes = [1, 1, 128], strides = [1, 1, 1]} : vector<3x3x128xf32> to vector<1x1x128xf32>
      %111 = vector.shape_cast %110 : vector<1x1x128xf32> to vector<1x128xf32>
      %112 = arith.addf %109, %111 : vector<1x128xf32>
      %113 = arith.maximumf %104, %112 : vector<1x128xf32>
      %114 = vector.extract_strided_slice %78 {offsets = [2, 0, 0], sizes = [1, 1, 128], strides = [1, 1, 1]} : vector<3x3x128xf32> to vector<1x1x128xf32>
      %115 = vector.shape_cast %114 : vector<1x1x128xf32> to vector<1x128xf32>
      %116 = vector.extract_strided_slice %78 {offsets = [0, 1, 0], sizes = [1, 1, 128], strides = [1, 1, 1]} : vector<3x3x128xf32> to vector<1x1x128xf32>
      %117 = vector.shape_cast %116 : vector<1x1x128xf32> to vector<1x128xf32>
      %118 = arith.addf %115, %117 : vector<1x128xf32>
      %119 = vector.extract_strided_slice %78 {offsets = [1, 2, 0], sizes = [1, 1, 128], strides = [1, 1, 1]} : vector<3x3x128xf32> to vector<1x1x128xf32>
      %120 = vector.shape_cast %119 : vector<1x1x128xf32> to vector<1x128xf32>
      %121 = arith.addf %118, %120 : vector<1x128xf32>
      %122 = arith.maximumf %113, %121 : vector<1x128xf32>
      %123 = vector.extract_strided_slice %78 {offsets = [2, 0, 0], sizes = [1, 1, 128], strides = [1, 1, 1]} : vector<3x3x128xf32> to vector<1x1x128xf32>
      %124 = vector.shape_cast %123 : vector<1x1x128xf32> to vector<1x128xf32>
      %125 = vector.extract_strided_slice %78 {offsets = [1, 1, 0], sizes = [1, 1, 128], strides = [1, 1, 1]} : vector<3x3x128xf32> to vector<1x1x128xf32>
      %126 = vector.shape_cast %125 : vector<1x1x128xf32> to vector<1x128xf32>
      %127 = arith.addf %124, %126 : vector<1x128xf32>
      %128 = vector.extract_strided_slice %78 {offsets = [0, 2, 0], sizes = [1, 1, 128], strides = [1, 1, 1]} : vector<3x3x128xf32> to vector<1x1x128xf32>
      %129 = vector.shape_cast %128 : vector<1x1x128xf32> to vector<1x128xf32>
      %130 = arith.addf %127, %129 : vector<1x128xf32>
      %131 = arith.maximumf %122, %130 : vector<1x128xf32>
      %132 = arith.subf %77, %131 : vector<1x128xf32>
      %133 = vector.shape_cast %132 : vector<1x128xf32> to vector<1x1x128xf32>
      %c0_46 = arith.constant 0 : index
      %c0_47 = arith.constant 0 : index
      %c0_48 = arith.constant 0 : index
      %134 = vector.load %arg4[%c0_46, %c0_47, %c0_48] : memref<1x1x128xf32, #tpu.memory_space<vmem>>, vector<1x1x128xf32>
      tpu.vector_store %arg4[%c0_46, %c0_47, %c0_48], %133 {strides = array<i32>} : memref<1x1x128xf32, #tpu.memory_space<vmem>>, vector<1x1x128xf32>,
    } else {
    }
    return
  }
  func.func @transform_0(%arg0: i32, %arg1: i32) -> (i32, i32, i32) {
    %c0_i32 = arith.constant 0 : i32
    %c0_i32_0 = arith.constant 0 : i32
    return %c0_i32, %arg1, %arg0 : i32, i32, i32
  }
  func.func @transform_1(%arg0: i32, %arg1: i32) -> (i32, i32) {
    %c0_i32 = arith.constant 0 : i32
    %c0_i32_0 = arith.constant 0 : i32
    return %c0_i32, %arg0 : i32, i32
  }
  func.func @transform_2(%arg0: i32, %arg1: i32) -> (i32, i32, i32) {
    %c0_i32 = arith.constant 0 : i32
    %c0_i32_0 = arith.constant 0 : i32
    %c0_i32_1 = arith.constant 0 : i32
    return %arg0, %c0_i32, %c0_i32_0 : i32, i32, i32
  }
}

</mosaic_0001>

<llo_original>
// kernel: tpu_custom_call.1
$region0: #{tpu_custom_call.1}
  #allocation0 [shape = 'u32[]', space=smem, size = 0x4, offset = 0x4, fixed_abs, tag = 'smem constant byte address 0x4 - core index']
  #allocation1 [shape = 'u32[144,128]{1,0:T(1,128)}', space=vmem, size = 0x12000, scoped, tag = 'internal scratch']
  #allocation2 [shape = 'f32[3,128]{1,0:T(4,128)}', space=vmem, size = 0x800, scoped, tag = 'scratch operand']
  #allocation3 [shape = 'f32[3,128]{1,0:T(4,128)}', space=vmem, size = 0x800, scoped, tag = 'scratch operand']
  #allocation4 [shape = 'f32[3,3,128]{2,1,0:T(4,128)}', space=vmem, size = 0x1800, scoped, tag = 'scratch operand']
  %s0 = inlined_call_operand.hbm [shape: f32[3,10,128], index: 0, kind: input, shape index: {}]
  %s1 = inlined_call_operand.hbm [shape: s32[3,128], index: 1, kind: input, shape index: {}]
  %s2 = inlined_call_operand.hbm [shape: f32[1,1,128], index: 2, kind: output, shape index: {}]
  %s3 = sld [smem:[#allocation0]]
  $region34: #{tpu_custom_call.1} parent=0
    _
  %s5 = ssub.s32 1, %s3
  %s6 = scalar_select 0, %s5, %s3
  $region1: #{tpu_custom_call.1} parent=0
    #allocation5 [shape = 'u8[24576]{0}', space=vmem, size = 0x6000, scoped, tag = 'input window, operand 0, single buffered']
    #allocation6 [shape = 's32[1]{0}', space=sflag, size = 0x4, scoped, tag = 'scoped memory for tpu_custom_call.1']
    #allocation7 [shape = 's32[1]{0}', space=sflag, size = 0x4, scoped, tag = 'scoped memory for tpu_custom_call.1']
    #allocation8 [shape = 'u8[2048]{0}', space=vmem, size = 0x800, scoped, tag = 'input window, operand 1, single buffered']
    #allocation9 [shape = 's32[1]{0}', space=sflag, size = 0x4, scoped, tag = 'scoped memory for tpu_custom_call.1']
    #allocation10 [shape = 'u8[512]{0}', space=vmem, size = 0x400, scoped, tag = 'output window, operand 0, single buffered']
    %7 = vsyncpa [#allocation6], 0
    %8 = vsyncpa [#allocation9], 0
    %9 = vsyncpa [#allocation7], 0
    // Predicated region
    $region2: #{tpu_custom_call.1} parent=1 // pred_check
      _
    $region3: #{tpu_custom_call.1} parent=1 // pred_check_branch
      %11 = sbr.rel (0) target = $region5
    $region4: #{tpu_custom_call.1} parent=1 // pred_region
      %s13 = ssub.s32 768, 768
      %14 = vsyncadd [#allocation6], %s13
      %s15 = sshll.u32 [#allocation5], 4
      %s16 = int_to_ptr.vmem [resolvable:$true] %s15
      %21 = dma.hbm_to_vmem [thread:$0]  %s0, 768, %s16, [#allocation6], 128, 128, 8
    $region5: #{tpu_custom_call.1} parent=1 // pred_fallthru
      _
    // Predicated region
    $region6: #{tpu_custom_call.1} parent=1 // pred_check
      _
    $region7: #{tpu_custom_call.1} parent=1 // pred_check_branch
      %23 = sbr.rel (0) target = $region9
    $region8: #{tpu_custom_call.1} parent=1 // pred_region
      %s25 = ssub.s32 64, 64
      %26 = vsyncadd [#allocation9], %s25
      %s28 = sshll.u32 [#allocation8], 4
      %s29 = int_to_ptr.vmem [resolvable:$true] %s28
      %31 = dma.hbm_to_vmem [thread:$0]  %s1, 64, %s29, [#allocation9]
    $region9: #{tpu_custom_call.1} parent=1 // pred_fallthru
      _
    // Predicated region
    $region10: #{tpu_custom_call.1} parent=1 // pred_check
      _
    $region11: #{tpu_custom_call.1} parent=1 // pred_check_branch
      %33 = sbr.rel (0) target = $region13
    $region12: #{tpu_custom_call.1} parent=1 // pred_region
      %34 = dma.done [#allocation6], 768
    $region13: #{tpu_custom_call.1} parent=1 // pred_fallthru
      _
    // Predicated region
    $region14: #{tpu_custom_call.1} parent=1 // pred_check
      _
    $region15: #{tpu_custom_call.1} parent=1 // pred_check_branch
      %36 = sbr.rel (0) target = $region17
    $region16: #{tpu_custom_call.1} parent=1 // pred_region
      %37 = dma.done [#allocation9], 64
    $region17: #{tpu_custom_call.1} parent=1 // pred_fallthru
      _
    %p38 = scmp.eq.s32.totalorder 0, 0
    // Predicated region
    $region18: #{tpu_custom_call.1} parent=1 // pred_check
      %p39 = pneg %p38
    $region19: #{tpu_custom_call.1} parent=1 // pred_check_branch
      %41 = sbr.rel (%p39) target = $region21
    $region20: #{tpu_custom_call.1} parent=1 // pred_region
      %42 = vst [vmem:[#allocation2] sm:$0x7] -inf
      %43 = vst [vmem:[#allocation3] sm:$0x7] 0.0
      %44 = vst [vmem:[#allocation4] sm:$0x7] 0.0
      %45 = vst [vmem:[#allocation4 + $0x4] sm:$0x7] 0.0
      %46 = vst [vmem:[#allocation4 + $0x8] sm:$0x7] 0.0
    $region21: #{tpu_custom_call.1} parent=1 // pred_fallthru
      _
    %v47 = vld [vmem:[#allocation5] sm:$0xff]
    %v48 = vld [vmem:[#allocation5 + $0x8] sm:$0x3]
    %v49 = vld [vmem:[#allocation5 + $0x10] sm:$0xff]
    %v50 = vld [vmem:[#allocation5 + $0x18] sm:$0x3]
    %v51 = vld [vmem:[#allocation5 + $0x20] sm:$0xff]
    %v52 = vld [vmem:[#allocation5 + $0x28] sm:$0x3]
    %v53 = vld [vmem:[#allocation8] sm:$0x7]
    %v54 = vld [vmem:[#allocation2] sm:$0x7]
    %vm55 = vcmask 1041408
    %v56 = vsel %vm55, %v48, -inf
    %v57 = vmax.f32 %v47, %v56
    %v58 = vrot.slane %v57, 4
    %v59 = vmax.f32 %v57, %v58
    %v60 = vrot.slane %v59, 2
    %v61 = vmax.f32 %v59, %v60
    %v62 = vrot.slane %v61, 1
    %v63 = vmax.f32 %v61, %v62
    %v64 = vsel %vm55, %v50, -inf
    %v65 = vmax.f32 %v49, %v64
    %v66 = vrot.slane %v65, 4
    %v67 = vmax.f32 %v65, %v66
    %v68 = vrot.slane %v67, 2
    %v69 = vmax.f32 %v67, %v68
    %v70 = vrot.slane %v69, 1
    %v71 = vmax.f32 %v69, %v70
    %v72 = vsel %vm55, %v52, -inf
    %v73 = vmax.f32 %v51, %v72
    %v74 = vrot.slane %v73, 4
    %v75 = vmax.f32 %v73, %v74
    %v76 = vrot.slane %v75, 2
    %v77 = vmax.f32 %v75, %v76
    %v78 = vrot.slane %v77, 1
    %v79 = vmax.f32 %v77, %v78
    %vm83 = vcmask 1041409
    %v84 = vsel %vm83, %v71, %v63
    %vm85 = vcmask 1042434
    %v86 = vsel %vm85, %v79, %v84
    %v88 = vmax.f32 %v54, %v86
    %v89 = vld [vmem:[#allocation3] sm:$0x7]
    %v90 = vsub.f32 %v54, %v88
    %v91 = vmul.f32 %v90, 1.442695
    %v92 = vpow.pop %v91
    %v93 = vmul.f32 %v89, %v92
    %v96 = vunpack.c.l.s4 1966171168
    %v97 = vunpack.c.0.s8 %v96
    %v98 = vlaneseq
    %v99 = vshrl.u32 %v98, 7
    %v100 = vsub.s32 %v97, %v99
    %v101 = vrot.slane %v88, %v100
    %v102 = vcombine.high %v101, %v101
    %v104 = vunpack.c.l.s4 1966171168
    %v105 = vunpack.c.0.s8 %v104
    %v106 = vlaneseq
    %v107 = vshrl.u32 %v106, 7
    %v108 = vsub.s32 %v105, %v107
    %v109 = vrot.slane %v101, %v108
    %v111 = vunpack.c.l.s4 1966171168
    %v112 = vunpack.c.0.s8 %v111
    %v113 = vlaneseq
    %v114 = vshrl.u32 %v113, 7
    %v115 = vsub.s32 %v112, %v114
    %v116 = vrot.slane %v102, %v115
    %v117 = vcombine.high %v109, %v109
    %v118 = vlaneseq
    %v119 = vshrl.u32 %v118, 7
    %v120 = vsub.s32 0, %v119
    %v121 = vrot.slane %v109, %v120
    %v122 = vlaneseq
    %v123 = vshrl.u32 %v122, 7
    %v124 = vsub.s32 0, %v123
    %v125 = vrot.slane %v116, %v124
    %v126 = vlaneseq
    %v127 = vshrl.u32 %v126, 7
    %v128 = vsub.s32 0, %v127
    %v129 = vrot.slane %v117, %v128
    %v133 = vsub.f32 %v47, %v121
    %v134 = vsub.f32 %v48, %v121
    %v135 = vsub.f32 %v49, %v125
    %v136 = vsub.f32 %v50, %v125
    %v137 = vsub.f32 %v51, %v129
    %v138 = vsub.f32 %v52, %v129
    %v139 = vmul.f32 %v133, 1.442695
    %v140 = vpow.pop %v139
    %v141 = vmul.f32 %v134, 1.442695
    %v142 = vpow.pop %v141
    %v143 = vmul.f32 %v135, 1.442695
    %v144 = vpow.pop %v143
    %v145 = vmul.f32 %v136, 1.442695
    %v146 = vpow.pop %v145
    %v147 = vmul.f32 %v137, 1.442695
    %v148 = vpow.pop %v147
    %v149 = vmul.f32 %v138, 1.442695
    %v150 = vpow.pop %v149
    %v151 = vsel %vm55, %v142, 0.0
    %v152 = vadd.f32 %v140, %v151
    %v153 = vrot.slane %v152, 4
    %v154 = vadd.f32 %v152, %v153
    %v155 = vrot.slane %v154, 2
    %v156 = vadd.f32 %v154, %v155
    %v157 = vrot.slane %v156, 1
    %v158 = vadd.f32 %v156, %v157
    %v159 = vsel %vm55, %v146, 0.0
    %v160 = vadd.f32 %v144, %v159
    %v161 = vrot.slane %v160, 4
    %v162 = vadd.f32 %v160, %v161
    %v163 = vrot.slane %v162, 2
    %v164 = vadd.f32 %v162, %v163
    %v165 = vrot.slane %v164, 1
    %v166 = vadd.f32 %v164, %v165
    %v167 = vsel %vm55, %v150, 0.0
    %v168 = vadd.f32 %v148, %v167
    %v169 = vrot.slane %v168, 4
    %v170 = vadd.f32 %v168, %v169
    %v171 = vrot.slane %v170, 2
    %v172 = vadd.f32 %v170, %v171
    %v173 = vrot.slane %v172, 1
    %v174 = vadd.f32 %v172, %v173
    %v178 = vsel %vm83, %v166, %v158
    %v179 = vsel %vm85, %v174, %v178
    %v181 = vadd.f32 %v93, %v179
    %182 = vst [vmem:[#allocation3] sm:$0x7] %v181
    %183 = vst [vmem:[#allocation2] sm:$0x7] %v88
    %v184 = vlaneseq
    %v185 = vshrl.u32 %v184, 7
    %v186 = vadd.s32 %v185, 8
    %s187 = smul.u32 0, 10
    %v188 = vstv %s187
    %v189 = vadd.s32 %v185, %v188
    %v190 = vadd.s32 %v186, %v188
    %v191 = vlaneseq
    %v192 = vshrl.u32 %v191, 7
    %v193 = vsub.s32 0, %v192
    %v194 = vrot.slane %v53, %v193
    %vm195 = vcmp.eq.s32.totalorder %v189, %v194
    %vm196 = vcmp.eq.s32.totalorder %v190, %v194
    %v197 = vsel %vm195, 1, 0
    %v198 = vsel %vm196, 1, 0
    %vm199 = vcmp.eq.s32.totalorder %v197, 1
    %vm200 = vcmp.eq.s32.totalorder %v198, 1
    %v201 = vsel %vm199, %v47, 0.0
    %v202 = vsel %vm200, %v48, 0.0
    %v203 = vsel %vm199, %v49, 0.0
    %v204 = vsel %vm200, %v50, 0.0
    %v205 = vsel %vm199, %v51, 0.0
    %v206 = vsel %vm200, %v52, 0.0
    %v207 = vsel %vm55, %v202, 0.0
    %v208 = vadd.f32 %v201, %v207
    %v209 = vrot.slane %v208, 4
    %v210 = vadd.f32 %v208, %v209
    %v211 = vrot.slane %v210, 2
    %v212 = vadd.f32 %v210, %v211
    %v213 = vrot.slane %v212, 1
    %v214 = vadd.f32 %v212, %v213
    %v215 = vsel %vm55, %v204, 0.0
    %v216 = vadd.f32 %v203, %v215
    %v217 = vrot.slane %v216, 4
    %v218 = vadd.f32 %v216, %v217
    %v219 = vrot.slane %v218, 2
    %v220 = vadd.f32 %v218, %v219
    %v221 = vrot.slane %v220, 1
    %v222 = vadd.f32 %v220, %v221
    %v223 = vsel %vm55, %v206, 0.0
    %v224 = vadd.f32 %v205, %v223
    %v225 = vrot.slane %v224, 4
    %v226 = vadd.f32 %v224, %v225
    %v227 = vrot.slane %v226, 2
    %v228 = vadd.f32 %v226, %v227
    %v229 = vrot.slane %v228, 1
    %v230 = vadd.f32 %v228, %v229
    %v231 = vld [vmem:[#allocation4] sm:$0x7]
    %v235 = vsel %vm83, %v222, %v214
    %v236 = vsel %vm85, %v230, %v235
    %v238 = vadd.f32 %v231, %v236
    %239 = vst [vmem:[#allocation4] sm:$0x7] %v238
    %v240 = vlaneseq
    %v241 = vshrl.u32 %v240, 7
    %v242 = vsub.s32 1, %v241
    %v243 = vrot.slane %v53, %v242
    %vm244 = vcmp.eq.s32.totalorder %v189, %v243
    %vm245 = vcmp.eq.s32.totalorder %v190, %v243
    %v246 = vsel %vm244, 1, 0
    %v247 = vsel %vm245, 1, 0
    %vm248 = vcmp.eq.s32.totalorder %v246, 1
    %vm249 = vcmp.eq.s32.totalorder %v247, 1
    %v250 = vsel %vm248, %v47, 0.0
    %v251 = vsel %vm249, %v48, 0.0
    %v252 = vsel %vm248, %v49, 0.0
    %v253 = vsel %vm249, %v50, 0.0
    %v254 = vsel %vm248, %v51, 0.0
    %v255 = vsel %vm249, %v52, 0.0
    %v256 = vsel %vm55, %v251, 0.0
    %v257 = vadd.f32 %v250, %v256
    %v258 = vrot.slane %v257, 4
    %v259 = vadd.f32 %v257, %v258
    %v260 = vrot.slane %v259, 2
    %v261 = vadd.f32 %v259, %v260
    %v262 = vrot.slane %v261, 1
    %v263 = vadd.f32 %v261, %v262
    %v264 = vsel %vm55, %v253, 0.0
    %v265 = vadd.f32 %v252, %v264
    %v266 = vrot.slane %v265, 4
    %v267 = vadd.f32 %v265, %v266
    %v268 = vrot.slane %v267, 2
    %v269 = vadd.f32 %v267, %v268
    %v270 = vrot.slane %v269, 1
    %v271 = vadd.f32 %v269, %v270
    %v272 = vsel %vm55, %v255, 0.0
    %v273 = vadd.f32 %v254, %v272
    %v274 = vrot.slane %v273, 4
    %v275 = vadd.f32 %v273, %v274
    %v276 = vrot.slane %v275, 2
    %v277 = vadd.f32 %v275, %v276
    %v278 = vrot.slane %v277, 1
    %v279 = vadd.f32 %v277, %v278
    %s280 = scalar_lea.vmem [#allocation4], 4
    %v281 = vld [vmem:[%s280] sm:$0x7]
    %v285 = vsel %vm83, %v271, %v263
    %v286 = vsel %vm85, %v279, %v285
    %v288 = vadd.f32 %v281, %v286
    %289 = vst [vmem:[%s280] sm:$0x7] %v288
    %v290 = vlaneseq
    %v291 = vshrl.u32 %v290, 7
    %v292 = vsub.s32 2, %v291
    %v293 = vrot.slane %v53, %v292
    %vm294 = vcmp.eq.s32.totalorder %v189, %v293
    %vm295 = vcmp.eq.s32.totalorder %v190, %v293
    %v296 = vsel %vm294, 1, 0
    %v297 = vsel %vm295, 1, 0
    %vm298 = vcmp.eq.s32.totalorder %v296, 1
    %vm299 = vcmp.eq.s32.totalorder %v297, 1
    %v300 = vsel %vm298, %v47, 0.0
    %v301 = vsel %vm299, %v48, 0.0
    %v302 = vsel %vm298, %v49, 0.0
    %v303 = vsel %vm299, %v50, 0.0
    %v304 = vsel %vm298, %v51, 0.0
    %v305 = vsel %vm299, %v52, 0.0
    %v306 = vsel %vm55, %v301, 0.0
    %v307 = vadd.f32 %v300, %v306
    %v308 = vrot.slane %v307, 4
    %v309 = vadd.f32 %v307, %v308
    %v310 = vrot.slane %v309, 2
    %v311 = vadd.f32 %v309, %v310
    %v312 = vrot.slane %v311, 1
    %v313 = vadd.f32 %v311, %v312
    %v314 = vsel %vm55, %v303, 0.0
    %v315 = vadd.f32 %v302, %v314
    %v316 = vrot.slane %v315, 4
    %v317 = vadd.f32 %v315, %v316
    %v318 = vrot.slane %v317, 2
    %v319 = vadd.f32 %v317, %v318
    %v320 = vrot.slane %v319, 1
    %v321 = vadd.f32 %v319, %v320
    %v322 = vsel %vm55, %v305, 0.0
    %v323 = vadd.f32 %v304, %v322
    %v324 = vrot.slane %v323, 4
    %v325 = vadd.f32 %v323, %v324
    %v326 = vrot.slane %v325, 2
    %v327 = vadd.f32 %v325, %v326
    %v328 = vrot.slane %v327, 1
    %v329 = vadd.f32 %v327, %v328
    %s330 = scalar_lea.vmem [#allocation4], 8
    %v331 = vld [vmem:[%s330] sm:$0x7]
    %v335 = vsel %vm83, %v321, %v313
    %v336 = vsel %vm85, %v329, %v335
    %v338 = vadd.f32 %v331, %v336
    %339 = vst [vmem:[%s330] sm:$0x7] %v338
    // Predicated region
    $region22: #{tpu_custom_call.1} parent=1 // pred_check
      %p340 = pneg %p38
    $region23: #{tpu_custom_call.1} parent=1 // pred_check_branch
      %342 = sbr.rel (%p340) target = $region25
    $region24: #{tpu_custom_call.1} parent=1 // pred_region
      %v343 = vld [vmem:[#allocation2] sm:$0x7]
      %v344 = vld [vmem:[#allocation3] sm:$0x7]
      %v345 = vlog2.pop %v344
      %v346 = vmul.f32 %v345, 0.6931472
      %v347 = vadd.f32 %v343, %v346
      %vm348 = vcmask 1042432
      %v349 = vsel %vm348, %v347, 0.0
      %v350 = vrot.slane %v349, 4
      %v351 = vadd.f32 %v349, %v350
      %v352 = vrot.slane %v351, 2
      %v353 = vadd.f32 %v351, %v352
      %v354 = vrot.slane %v353, 1
      %v355 = vadd.f32 %v353, %v354
      %v356 = vld [vmem:[#allocation4] sm:$0x7]
      %v357 = vld [vmem:[#allocation4 + $0x4] sm:$0x7]
      %v358 = vld [vmem:[#allocation4 + $0x8] sm:$0x7]
      %v360 = vrot.slane %v357, 1
      %v362 = vadd.f32 %v356, %v360
      %v364 = vrot.slane %v358, 2
      %v366 = vadd.f32 %v362, %v364
      %v367 = vrot.slane %v358, 1
      %v369 = vadd.f32 %v356, %v367
      %v370 = vrot.slane %v357, 2
      %v372 = vadd.f32 %v369, %v370
      %v373 = vmax.f32 %v366, %v372
      %v375 = vrot.slane %v356, 1
      %v377 = vadd.f32 %v357, %v375
      %v378 = vadd.f32 %v377, %v364
      %v379 = vmax.f32 %v373, %v378
      %v380 = vadd.f32 %v357, %v367
      %v381 = vrot.slane %v356, 2
      %v383 = vadd.f32 %v380, %v381
      %v384 = vmax.f32 %v379, %v383
      %v385 = vadd.f32 %v358, %v375
      %v386 = vadd.f32 %v385, %v370
      %v387 = vmax.f32 %v384, %v386
      %v388 = vadd.f32 %v358, %v360
      %v389 = vadd.f32 %v388, %v381
      %v390 = vmax.f32 %v387, %v389
      %v391 = vsub.f32 %v355, %v390
      %392 = vst [vmem:[#allocation10] sm:$0x1] %v391
    $region25: #{tpu_custom_call.1} parent=1 // pred_fallthru
      _
    // Predicated region
    $region26: #{tpu_custom_call.1} parent=1 // pred_check
      _
    $region27: #{tpu_custom_call.1} parent=1 // pred_check_branch
      %394 = sbr.rel (0) target = $region29
    $region28: #{tpu_custom_call.1} parent=1 // pred_region
      %s396 = ssub.s32 16, 16
      %397 = vsyncadd [#allocation7], %s396
      %s399 = sshll.u32 [#allocation10], 4
      %s400 = int_to_ptr.vmem [resolvable:$true] %s399
      %402 = dma.vmem_to_hbm [thread:$0]  %s400, 16, %s2, [#allocation7]
    $region29: #{tpu_custom_call.1} parent=1 // pred_fallthru
      _
    // Predicated region
    $region30: #{tpu_custom_call.1} parent=1 // pred_check
      _
    $region31: #{tpu_custom_call.1} parent=1 // pred_check_branch
      %404 = sbr.rel (0) target = $region33
    $region32: #{tpu_custom_call.1} parent=1 // pred_region
      %405 = dma.done [#allocation7], 16
    $region33: #{tpu_custom_call.1} parent=1 // pred_fallthru
      _
    %406 = vsyncpa [#allocation6], 1
    %407 = vsyncpa [#allocation9], 1
    %408 = vsyncpa [#allocation7], 1

</llo_original>
